<compile_context>
chip_gen: v7x
topology: tpu7x:2x2x1
jax: 0.10.0
libtpu: 0.0.40
codegen_flags: <defaults>
</compile_context>

<pallas_src>
import functools

import jax
import jax.numpy as jnp
from jax.experimental import pallas as pl
from jax.experimental.pallas import tpu as pltpu

EPS = 1e-5      # PyTorch BatchNorm1d default eps
H_PAD = 128     # hidden dim zero-padded to a full 128-lane tile


def qnet_kernel(state_ref, action_ref, w1s_ref, w1a_ref, b1_ref,
                w2_ref, b2_ref, w3_ref, b3_ref, out_ref,
                sum1_ref, sq1_ref, sum2_ref, sq2_ref,
                *, n_valid, tile_b, needs_mask):
    """Grid = (phase, batch_tile); phase 0/1 accumulate BN stats, phase 2 emits q."""
    phase = pl.program_id(0)
    t = pl.program_id(1)
    inv_n = 1.0 / float(n_valid)

    @pl.when(jnp.logical_and(phase == 0, t == 0))
    def _init_stats():
        sum1_ref[...] = jnp.zeros_like(sum1_ref)
        sq1_ref[...] = jnp.zeros_like(sq1_ref)
        sum2_ref[...] = jnp.zeros_like(sum2_ref)
        sq2_ref[...] = jnp.zeros_like(sq2_ref)

    if needs_mask:
        row = jax.lax.broadcasted_iota(jnp.int32, (tile_b, 1), 0) + t * tile_b
        valid = row < n_valid

    def mask_rows(h):
        # Zero out padded batch rows so they never contribute to BN statistics.
        return jnp.where(valid, h, 0.0) if needs_mask else h

    # Linear-1 as two K-pushes (state part + action part); no concatenated
    # input is ever materialized in HBM.  ReLU on the VPU.
    h1 = (jnp.dot(state_ref[...], w1s_ref[...], preferred_element_type=jnp.float32)
          + jnp.dot(action_ref[...], w1a_ref[...], preferred_element_type=jnp.float32)
          + b1_ref[...])
    h1 = mask_rows(jnp.maximum(h1, 0.0))

    @pl.when(phase == 0)
    def _accum_stats1():
        sum1_ref[...] += jnp.sum(h1, axis=0, keepdims=True)
        sq1_ref[...] += jnp.sum(h1 * h1, axis=0, keepdims=True)

    @pl.when(phase >= 1)
    def _phase_1_and_2():
        # BatchNorm1d #1 — one-pass stats (affine folded into W2/b2).
        mean1 = sum1_ref[...] * inv_n
        var1 = jnp.maximum(sq1_ref[...] * inv_n - mean1 * mean1, 0.0)
        h1n = (h1 - mean1) * jax.lax.rsqrt(var1 + EPS)

        # Linear-2 (BN1 affine pre-folded) + ReLU.
        h2 = jnp.dot(h1n.astype(w2_ref.dtype), w2_ref[...],
                     preferred_element_type=jnp.float32) + b2_ref[...]
        h2 = mask_rows(jnp.maximum(h2, 0.0))

        @pl.when(phase == 1)
        def _accum_stats2():
            sum2_ref[...] += jnp.sum(h2, axis=0, keepdims=True)
            sq2_ref[...] += jnp.sum(h2 * h2, axis=0, keepdims=True)

        @pl.when(phase == 2)
        def _emit_q():
            # BatchNorm1d #2 — one-pass stats (affine folded into w3/b3).
            mean2 = sum2_ref[...] * inv_n
            var2 = jnp.maximum(sq2_ref[...] * inv_n - mean2 * mean2, 0.0)
            h2n = (h2 - mean2) * jax.lax.rsqrt(var2 + EPS)
            # Lane-dense head on the MXU: (1,H) . (TILE_B,H)^T -> (1, TILE_B).
            q = jax.lax.dot_general(
                w3_ref[...], h2n,
                dimension_numbers=(((1,), (1,)), ((), ())),
                preferred_element_type=jnp.float32) + b3_ref[...]
            out_ref[...] = q


def prepare_kernel_params(params, state_dim, action_dim, h_pad=H_PAD,
                          matmul_dtype=jnp.float32):
    """One-time transform: fold BN affines into the next linear, split W1 into
    state/action parts, zero-pad the hidden dim to h_pad (128 lanes)."""
    H = params["w1"].shape[1]

    # Fold BN1 affine into Linear-2, BN2 affine into the head (exact: each BN
    # is immediately followed by a Linear).
    w2f = params["g1"].reshape(-1, 1) * params["w2"]
    b2f = params["b2"] + params["be1"] @ params["w2"]
    w3f = params["g2"].reshape(1, -1) * params["w3"].reshape(1, -1)   # (1, H)
    b3f = params["b3"] + params["be2"] @ params["w3"]                 # (1, 1)

    w1 = params["w1"]
    w1s = jnp.zeros((state_dim, h_pad), jnp.float32).at[:, :H].set(w1[:state_dim])
    w1a = jnp.zeros((action_dim, h_pad), jnp.float32).at[:, :H].set(w1[state_dim:])
    b1p = jnp.zeros((1, h_pad), jnp.float32).at[:, :H].set(params["b1"])
    w2p = jnp.zeros((h_pad, h_pad), jnp.float32).at[:H, :H].set(w2f)
    b2p = jnp.zeros((1, h_pad), jnp.float32).at[:, :H].set(b2f)
    w3p = jnp.zeros((1, h_pad), jnp.float32).at[:, :H].set(w3f)

    return {"w1s": w1s.astype(matmul_dtype), "w1a": w1a.astype(matmul_dtype),
            "b1": b1p, "w2": w2p.astype(matmul_dtype), "b2": b2p,
            "w3": w3p, "b3": b3f.astype(jnp.float32)}


def qnetwork_forward(state, action, kparams, tile_b=256):
    B, sd = state.shape
    ad = action.shape[1]
    h_pad = kparams["b1"].shape[1]
    in_dtype = kparams["w1s"].dtype

    # Pick the batch tile: single tile for small B, otherwise a multiple of 128
    # so the (1, tile_b) output block stays lane-aligned.
    b_pad = -(-B // 8) * 8
    if b_pad <= tile_b:
        tile_b = b_pad
    else:
        tile_b = max(128, (tile_b // 128) * 128)
        b_pad = -(-B // tile_b) * tile_b
    num_tiles = b_pad // tile_b

    state = state.astype(in_dtype)
    action = action.astype(in_dtype)
    if b_pad != B:
        state = jnp.pad(state, ((0, b_pad - B), (0, 0)))
        action = jnp.pad(action, ((0, b_pad - B), (0, 0)))

    def full(a):  # weight: whole array as one block, fetched once, stays resident
        return pl.BlockSpec(a.shape, lambda p, t: (0, 0))

    grid_spec = pltpu.PrefetchScalarGridSpec(
        num_scalar_prefetch=0,
        grid=(3, num_tiles),                    # (phase, batch tile)
        in_specs=[
            pl.BlockSpec((tile_b, sd), lambda p, t: (t, 0)),   # state tile
            pl.BlockSpec((tile_b, ad), lambda p, t: (t, 0)),   # action tile
            full(kparams["w1s"]), full(kparams["w1a"]), full(kparams["b1"]),
            full(kparams["w2"]), full(kparams["b2"]),
            full(kparams["w3"]), full(kparams["b3"]),
        ],
        out_specs=pl.BlockSpec((1, tile_b), lambda p, t: (0, t)),
        scratch_shapes=[pltpu.VMEM((1, h_pad), jnp.float32) for _ in range(4)],
    )

    kernel = functools.partial(qnet_kernel, n_valid=B, tile_b=tile_b,
                               needs_mask=(b_pad != B))

    out = pl.pallas_call(
        kernel,
        out_shape=jax.ShapeDtypeStruct((1, b_pad), jnp.float32),
        grid_spec=grid_spec,
        compiler_params=pltpu.CompilerParams(
            dimension_semantics=("arbitrary", "arbitrary")),
    )(state, action, kparams["w1s"], kparams["w1a"], kparams["b1"],
      kparams["w2"], kparams["b2"], kparams["w3"], kparams["b3"])

    return out[0, :B].reshape(B, 1)


# ----------------------------- setup & reference -----------------------------

def xavier_uniform(key, fan_in, fan_out):
    bound = jnp.sqrt(6.0 / (fan_in + fan_out))
    # PyTorch stores Linear.weight as [out, in]; we keep [in, out] for x @ W.
    return jax.random.uniform(key, (fan_in, fan_out), jnp.float32, -bound, bound)


def make_params(key, state_dim, action_dim, hidden_dim):
    # PyTorch init is gamma=1 / beta=0; randomize them here to exercise the
    # affine-fold path (forward-pass semantics unchanged).
    in_dim = state_dim + action_dim
    k1, k2, k3, k4, k5, k6, k7 = jax.random.split(key, 7)
    return {
        "w1": xavier_uniform(k1, in_dim, hidden_dim),
        "b1": jnp.zeros((1, hidden_dim), jnp.float32),
        "g1": 1.0 + 0.1 * jax.random.normal(k4, (1, hidden_dim), jnp.float32),
        "be1": 0.1 * jax.random.normal(k5, (1, hidden_dim), jnp.float32),
        "w2": xavier_uniform(k2, hidden_dim, hidden_dim),
        "b2": jnp.zeros((1, hidden_dim), jnp.float32),
        "g2": 1.0 + 0.1 * jax.random.normal(k6, (1, hidden_dim), jnp.float32),
        "be2": 0.1 * jax.random.normal(k7, (1, hidden_dim), jnp.float32),
        "w3": xavier_uniform(k3, hidden_dim, 1),
        "b3": jnp.zeros((1, 1), jnp.float32),
    }


def reference_forward(state, action, params):
    """Pure-JAX mirror of the PyTorch module (unfolded, unpadded params)."""
    x = jnp.concatenate([state, action], axis=1)
    h = jnp.maximum(x @ params["w1"] + params["b1"], 0.0)
    m = h.mean(0, keepdims=True); v = ((h - m) ** 2).mean(0, keepdims=True)
    h = (h - m) / jnp.sqrt(v + EPS) * params["g1"] + params["be1"]
    h = jnp.maximum(h @ params["w2"] + params["b2"], 0.0)
    m = h.mean(0, keepdims=True); v = ((h - m) ** 2).mean(0, keepdims=True)
    h = (h - m) / jnp.sqrt(v + EPS) * params["g2"] + params["be2"]
    return h @ params["w3"] + params["b3"]


if __name__ == "__main__":
    STATE_DIM, ACTION_DIM, HIDDEN_DIM = 6, 2, 32

    key = jax.random.PRNGKey(0)
    kp, ks, ka = jax.random.split(key, 3)
    params = make_params(kp, STATE_DIM, ACTION_DIM, HIDDEN_DIM)
    kparams = prepare_kernel_params(params, STATE_DIM, ACTION_DIM)

    # Small single-tile check (B=8).
    B = 8
    state = jax.random.normal(ks, (B, STATE_DIM), jnp.float32)
    action = jax.random.normal(ka, (B, ACTION_DIM), jnp.float32)
    out = jax.block_until_ready(qnetwork_forward(state, action, kparams))
    ref = reference_forward(state, action, params)
    assert out.shape == (B, 1)
    assert jnp.allclose(out, ref, atol=5e-4, rtol=5e-4), (out, ref)

    # Multi-tile check: exercises the batch grid, cross-tile BN statistics and
    # masking of the padded batch tail (B=300 -> 3 tiles of 128).
    B2 = 300
    ks2, ka2 = jax.random.split(jax.random.PRNGKey(1))
    state2 = jax.random.normal(ks2, (B2, STATE_DIM), jnp.float32)
    action2 = jax.random.normal(ka2, (B2, ACTION_DIM), jnp.float32)
    out2 = jax.block_until_ready(
        qnetwork_forward(state2, action2, kparams, tile_b=128))
    ref2 = reference_forward(state2, action2, params)
    assert out2.shape == (B2, 1)
    assert jnp.allclose(out2, ref2, atol=5e-4, rtol=5e-4), \
        float(jnp.max(jnp.abs(out2 - ref2)))

    print("KERNEL_OK")
</pallas_src>

<mosaic_0001>
module attributes {stable_mosaic.version = 11 : i64} {
  func.func @qnet_kernel(%arg0: i32, %arg1: i32, %arg2: memref<8x6xf32, #tpu.memory_space<vmem>>, %arg3: memref<8x2xf32, #tpu.memory_space<vmem>>, %arg4: memref<6x128xf32, #tpu.memory_space<vmem>>, %arg5: memref<2x128xf32, #tpu.memory_space<vmem>>, %arg6: memref<1x128xf32, #tpu.memory_space<vmem>>, %arg7: memref<128x128xf32, #tpu.memory_space<vmem>>, %arg8: memref<1x128xf32, #tpu.memory_space<vmem>>, %arg9: memref<1x128xf32, #tpu.memory_space<vmem>>, %arg10: memref<1x1xf32, #tpu.memory_space<vmem>>, %arg11: memref<1x8xf32, #tpu.memory_space<vmem>>, %arg12: memref<1x128xf32, #tpu.memory_space<vmem>>, %arg13: memref<1x128xf32, #tpu.memory_space<vmem>>, %arg14: memref<1x128xf32, #tpu.memory_space<vmem>>, %arg15: memref<1x128xf32, #tpu.memory_space<vmem>>) attributes {dimension_semantics = [#tpu.dimension_semantics<arbitrary>, #tpu.dimension_semantics<arbitrary>], iteration_bounds = array<i64: 3, 1>, scalar_prefetch = 0 : i64, scratch_operands = 4 : i64, tpu.core_type = #tpu.core_type<tc>, window_params = [{transform_indices = @transform_0, window_bounds = array<i64: 8, 6>}, {transform_indices = @transform_1, window_bounds = array<i64: 8, 2>}, {pipeline_mode = #tpu.pipeline_mode<synchronous>, transform_indices = @transform_2, window_bounds = array<i64: 6, 128>}, {pipeline_mode = #tpu.pipeline_mode<synchronous>, transform_indices = @transform_3, window_bounds = array<i64: 2, 128>}, {pipeline_mode = #tpu.pipeline_mode<synchronous>, transform_indices = @transform_4, window_bounds = array<i64: 1, 128>}, {pipeline_mode = #tpu.pipeline_mode<synchronous>, transform_indices = @transform_5, window_bounds = array<i64: 128, 128>}, {pipeline_mode = #tpu.pipeline_mode<synchronous>, transform_indices = @transform_6, window_bounds = array<i64: 1, 128>}, {pipeline_mode = #tpu.pipeline_mode<synchronous>, transform_indices = @transform_7, window_bounds = array<i64: 1, 128>}, {pipeline_mode = #tpu.pipeline_mode<synchronous>, transform_indices = @transform_8, window_bounds = array<i64: 1, 1>}, {transform_indices = @transform_9, window_bounds = array<i64: 1, 8>}]} {
    %c0_i32 = arith.constant 0 : i32
    %0 = arith.cmpi eq, %arg0, %c0_i32 : i32
    %c0_i32_0 = arith.constant 0 : i32
    %1 = arith.cmpi eq, %arg1, %c0_i32_0 : i32
    %2 = arith.andi %0, %1 : i1
    %3 = arith.extui %2 : i1 to i32
    %c0_i32_1 = arith.constant 0 : i32
    %4 = arith.cmpi ne, %3, %c0_i32_1 : i32
    scf.if %4 {
      %cst_16 = arith.constant 0.000000e+00 : f32
      %23 = vector.broadcast %cst_16 : f32 to vector<1x128xf32>
      %c0_17 = arith.constant 0 : index
      %c0_18 = arith.constant 0 : index
      %24 = vector.load %arg12[%c0_17, %c0_18] : memref<1x128xf32, #tpu.memory_space<vmem>>, vector<1x128xf32>
      tpu.vector_store %arg12[%c0_17, %c0_18], %23 {strides = array<i32>} : memref<1x128xf32, #tpu.memory_space<vmem>>, vector<1x128xf32>,
      %cst_19 = arith.constant 0.000000e+00 : f32
      %25 = vector.broadcast %cst_19 : f32 to vector<1x128xf32>
      %c0_20 = arith.constant 0 : index
      %c0_21 = arith.constant 0 : index
      %26 = vector.load %arg13[%c0_20, %c0_21] : memref<1x128xf32, #tpu.memory_space<vmem>>, vector<1x128xf32>
      tpu.vector_store %arg13[%c0_20, %c0_21], %25 {strides = array<i32>} : memref<1x128xf32, #tpu.memory_space<vmem>>, vector<1x128xf32>,
      %cst_22 = arith.constant 0.000000e+00 : f32
      %27 = vector.broadcast %cst_22 : f32 to vector<1x128xf32>
      %c0_23 = arith.constant 0 : index
      %c0_24 = arith.constant 0 : index
      %28 = vector.load %arg14[%c0_23, %c0_24] : memref<1x128xf32, #tpu.memory_space<vmem>>, vector<1x128xf32>
      tpu.vector_store %arg14[%c0_23, %c0_24], %27 {strides = array<i32>} : memref<1x128xf32, #tpu.memory_space<vmem>>, vector<1x128xf32>,
      %cst_25 = arith.constant 0.000000e+00 : f32
      %29 = vector.broadcast %cst_25 : f32 to vector<1x128xf32>
      %c0_26 = arith.constant 0 : index
      %c0_27 = arith.constant 0 : index
      %30 = vector.load %arg15[%c0_26, %c0_27] : memref<1x128xf32, #tpu.memory_space<vmem>>, vector<1x128xf32>
      tpu.vector_store %arg15[%c0_26, %c0_27], %29 {strides = array<i32>} : memref<1x128xf32, #tpu.memory_space<vmem>>, vector<1x128xf32>,
    } else {
    }
    %c0 = arith.constant 0 : index
    %c0_2 = arith.constant 0 : index
    %5 = vector.load %arg2[%c0, %c0_2] : memref<8x6xf32, #tpu.memory_space<vmem>>, vector<8x6xf32>
    %c0_3 = arith.constant 0 : index
    %c0_4 = arith.constant 0 : index
    %6 = vector.load %arg4[%c0_3, %c0_4] : memref<6x128xf32, #tpu.memory_space<vmem>>, vector<6x128xf32>
    %cst = arith.constant dense<0.000000e+00> : vector<8x128xf32>
    %7 = tpu.matmul %5, %6, %cst {dimension_numbers = #tpu.dot_dimension_numbers<[1], [0], [0], [1], [0, 0, 1, 1], [], []>} : vector<8x6xf32>, vector<6x128xf32>, vector<8x128xf32> -> vector<8x128xf32>
    %c0_5 = arith.constant 0 : index
    %c0_6 = arith.constant 0 : index
    %8 = vector.load %arg3[%c0_5, %c0_6] : memref<8x2xf32, #tpu.memory_space<vmem>>, vector<8x2xf32>
    %c0_7 = arith.constant 0 : index
    %c0_8 = arith.constant 0 : index
    %9 = vector.load %arg5[%c0_7, %c0_8] : memref<2x128xf32, #tpu.memory_space<vmem>>, vector<2x128xf32>
    %cst_9 = arith.constant dense<0.000000e+00> : vector<8x128xf32>
    %10 = tpu.matmul %8, %9, %cst_9 {dimension_numbers = #tpu.dot_dimension_numbers<[1], [0], [0], [1], [0, 0, 1, 1], [], []>} : vector<8x2xf32>, vector<2x128xf32>, vector<8x128xf32> -> vector<8x128xf32>
    %11 = arith.addf %7, %10 : vector<8x128xf32>
    %c0_10 = arith.constant 0 : index
    %c0_11 = arith.constant 0 : index
    %12 = vector.load %arg6[%c0_10, %c0_11] : memref<1x128xf32, #tpu.memory_space<vmem>>, vector<1x128xf32>
    %13 = vector.broadcast %12 : vector<1x128xf32> to vector<8x128xf32>
    %14 = arith.addf %11, %13 : vector<8x128xf32>
    %cst_12 = arith.constant 0.000000e+00 : f32
    %15 = vector.broadcast %cst_12 : f32 to vector<8x128xf32>
    %16 = arith.maximumf %14, %15 : vector<8x128xf32>
    %c0_i32_13 = arith.constant 0 : i32
    %17 = arith.cmpi eq, %arg0, %c0_i32_13 : i32
    %18 = arith.extui %17 : i1 to i32
    %c0_i32_14 = arith.constant 0 : i32
    %19 = arith.cmpi ne, %18, %c0_i32_14 : i32
    scf.if %19 {
      %c0_16 = arith.constant 0 : index
      %c0_17 = arith.constant 0 : index
      %23 = vector.load %arg12[%c0_16, %c0_17] : memref<1x128xf32, #tpu.memory_space<vmem>>, vector<1x128xf32>
      %cst_18 = arith.constant dense<0.000000e+00> : vector<128xf32>
      %24 = vector.multi_reduction <add>, %16, %cst_18 [0] : vector<8x128xf32> to vector<128xf32>
      %25 = vector.shape_cast %24 : vector<128xf32> to vector<1x128xf32>
      %26 = arith.addf %23, %25 : vector<1x128xf32>
      %c0_19 = arith.constant 0 : index
      %c0_20 = arith.constant 0 : index
      %27 = vector.load %arg12[%c0_19, %c0_20] : memref<1x128xf32, #tpu.memory_space<vmem>>, vector<1x128xf32>
      tpu.vector_store %arg12[%c0_19, %c0_20], %26 {strides = array<i32>} : memref<1x128xf32, #tpu.memory_space<vmem>>, vector<1x128xf32>,
      %c0_21 = arith.constant 0 : index
      %c0_22 = arith.constant 0 : index
      %28 = vector.load %arg13[%c0_21, %c0_22] : memref<1x128xf32, #tpu.memory_space<vmem>>, vector<1x128xf32>
      %29 = arith.mulf %16, %16 : vector<8x128xf32>
      %cst_23 = arith.constant dense<0.000000e+00> : vector<128xf32>
      %30 = vector.multi_reduction <add>, %29, %cst_23 [0] : vector<8x128xf32> to vector<128xf32>
      %31 = vector.shape_cast %30 : vector<128xf32> to vector<1x128xf32>
      %32 = arith.addf %28, %31 : vector<1x128xf32>
      %c0_24 = arith.constant 0 : index
      %c0_25 = arith.constant 0 : index
      %33 = vector.load %arg13[%c0_24, %c0_25] : memref<1x128xf32, #tpu.memory_space<vmem>>, vector<1x128xf32>
      tpu.vector_store %arg13[%c0_24, %c0_25], %32 {strides = array<i32>} : memref<1x128xf32, #tpu.memory_space<vmem>>, vector<1x128xf32>,
    } else {
    }
    %c1_i32 = arith.constant 1 : i32
    %20 = arith.cmpi sge, %arg0, %c1_i32 : i32
    %21 = arith.extui %20 : i1 to i32
    %c0_i32_15 = arith.constant 0 : i32
    %22 = arith.cmpi ne, %21, %c0_i32_15 : i32
    scf.if %22 {
      %c0_16 = arith.constant 0 : index
      %c0_17 = arith.constant 0 : index
      %23 = vector.load %arg12[%c0_16, %c0_17] : memref<1x128xf32, #tpu.memory_space<vmem>>, vector<1x128xf32>
      %cst_18 = arith.constant 1.250000e-01 : f32
      %24 = vector.broadcast %cst_18 : f32 to vector<1x128xf32>
      %25 = arith.mulf %23, %24 : vector<1x128xf32>
      %c0_19 = arith.constant 0 : index
      %c0_20 = arith.constant 0 : index
      %26 = vector.load %arg13[%c0_19, %c0_20] : memref<1x128xf32, #tpu.memory_space<vmem>>, vector<1x128xf32>
      %cst_21 = arith.constant 1.250000e-01 : f32
      %27 = vector.broadcast %cst_21 : f32 to vector<1x128xf32>
      %28 = arith.mulf %26, %27 : vector<1x128xf32>
      %29 = arith.mulf %25, %25 : vector<1x128xf32>
      %30 = arith.subf %28, %29 : vector<1x128xf32>
      %cst_22 = arith.constant 0.000000e+00 : f32
      %31 = vector.broadcast %cst_22 : f32 to vector<1x128xf32>
      %32 = arith.maximumf %30, %31 : vector<1x128xf32>
      %33 = vector.broadcast %25 : vector<1x128xf32> to vector<8x128xf32>
      %34 = arith.subf %16, %33 : vector<8x128xf32>
      %cst_23 = arith.constant 9.99999974E-6 : f32
      %35 = vector.broadcast %cst_23 : f32 to vector<1x128xf32>
      %36 = arith.addf %32, %35 : vector<1x128xf32>
      %37 = math.rsqrt %36 : vector<1x128xf32>
      %38 = vector.broadcast %37 : vector<1x128xf32> to vector<8x128xf32>
      %39 = arith.mulf %34, %38 : vector<8x128xf32>
      %c0_24 = arith.constant 0 : index
      %c0_25 = arith.constant 0 : index
      %40 = vector.load %arg7[%c0_24, %c0_25] : memref<128x128xf32, #tpu.memory_space<vmem>>, vector<128x128xf32>
      %cst_26 = arith.constant dense<0.000000e+00> : vector<8x128xf32>
      %41 = tpu.matmul %39, %40, %cst_26 {dimension_numbers = #tpu.dot_dimension_numbers<[1], [0], [0], [1], [0, 0, 1, 1], [], []>} : vector<8x128xf32>, vector<128x128xf32>, vector<8x128xf32> -> vector<8x128xf32>
      %c0_27 = arith.constant 0 : index
      %c0_28 = arith.constant 0 : index
      %42 = vector.load %arg8[%c0_27, %c0_28] : memref<1x128xf32, #tpu.memory_space<vmem>>, vector<1x128xf32>
      %43 = vector.broadcast %42 : vector<1x128xf32> to vector<8x128xf32>
      %44 = arith.addf %41, %43 : vector<8x128xf32>
      %cst_29 = arith.constant 0.000000e+00 : f32
      %45 = vector.broadcast %cst_29 : f32 to vector<8x128xf32>
      %46 = arith.maximumf %44, %45 : vector<8x128xf32>
      %c1_i32_30 = arith.constant 1 : i32
      %47 = arith.cmpi eq, %arg0, %c1_i32_30 : i32
      %48 = arith.extui %47 : i1 to i32
      %c0_i32_31 = arith.constant 0 : i32
      %49 = arith.cmpi ne, %48, %c0_i32_31 : i32
      scf.if %49 {
        %c0_33 = arith.constant 0 : index
        %c0_34 = arith.constant 0 : index
        %53 = vector.load %arg14[%c0_33, %c0_34] : memref<1x128xf32, #tpu.memory_space<vmem>>, vector<1x128xf32>
        %cst_35 = arith.constant dense<0.000000e+00> : vector<128xf32>
        %54 = vector.multi_reduction <add>, %46, %cst_35 [0] : vector<8x128xf32> to vector<128xf32>
        %55 = vector.shape_cast %54 : vector<128xf32> to vector<1x128xf32>
        %56 = arith.addf %53, %55 : vector<1x128xf32>
        %c0_36 = arith.constant 0 : index
        %c0_37 = arith.constant 0 : index
        %57 = vector.load %arg14[%c0_36, %c0_37] : memref<1x128xf32, #tpu.memory_space<vmem>>, vector<1x128xf32>
        tpu.vector_store %arg14[%c0_36, %c0_37], %56 {strides = array<i32>} : memref<1x128xf32, #tpu.memory_space<vmem>>, vector<1x128xf32>,
        %c0_38 = arith.constant 0 : index
        %c0_39 = arith.constant 0 : index
        %58 = vector.load %arg15[%c0_38, %c0_39] : memref<1x128xf32, #tpu.memory_space<vmem>>, vector<1x128xf32>
        %59 = arith.mulf %46, %46 : vector<8x128xf32>
        %cst_40 = arith.constant dense<0.000000e+00> : vector<128xf32>
        %60 = vector.multi_reduction <add>, %59, %cst_40 [0] : vector<8x128xf32> to vector<128xf32>
        %61 = vector.shape_cast %60 : vector<128xf32> to vector<1x128xf32>
        %62 = arith.addf %58, %61 : vector<1x128xf32>
        %c0_41 = arith.constant 0 : index
        %c0_42 = arith.constant 0 : index
        %63 = vector.load %arg15[%c0_41, %c0_42] : memref<1x128xf32, #tpu.memory_space<vmem>>, vector<1x128xf32>
        tpu.vector_store %arg15[%c0_41, %c0_42], %62 {strides = array<i32>} : memref<1x128xf32, #tpu.memory_space<vmem>>, vector<1x128xf32>,
      } else {
      }
      %c2_i32 = arith.constant 2 : i32
      %50 = arith.cmpi eq, %arg0, %c2_i32 : i32
      %51 = arith.extui %50 : i1 to i32
      %c0_i32_32 = arith.constant 0 : i32
      %52 = arith.cmpi ne, %51, %c0_i32_32 : i32
      scf.if %52 {
        %c0_33 = arith.constant 0 : index
        %c0_34 = arith.constant 0 : index
        %53 = vector.load %arg14[%c0_33, %c0_34] : memref<1x128xf32, #tpu.memory_space<vmem>>, vector<1x128xf32>
        %cst_35 = arith.constant 1.250000e-01 : f32
        %54 = vector.broadcast %cst_35 : f32 to vector<1x128xf32>
        %55 = arith.mulf %53, %54 : vector<1x128xf32>
        %c0_36 = arith.constant 0 : index
        %c0_37 = arith.constant 0 : index
        %56 = vector.load %arg15[%c0_36, %c0_37] : memref<1x128xf32, #tpu.memory_space<vmem>>, vector<1x128xf32>
        %cst_38 = arith.constant 1.250000e-01 : f32
        %57 = vector.broadcast %cst_38 : f32 to vector<1x128xf32>
        %58 = arith.mulf %56, %57 : vector<1x128xf32>
        %59 = arith.mulf %55, %55 : vector<1x128xf32>
        %60 = arith.subf %58, %59 : vector<1x128xf32>
        %cst_39 = arith.constant 0.000000e+00 : f32
        %61 = vector.broadcast %cst_39 : f32 to vector<1x128xf32>
        %62 = arith.maximumf %60, %61 : vector<1x128xf32>
        %63 = vector.broadcast %55 : vector<1x128xf32> to vector<8x128xf32>
        %64 = arith.subf %46, %63 : vector<8x128xf32>
        %cst_40 = arith.constant 9.99999974E-6 : f32
        %65 = vector.broadcast %cst_40 : f32 to vector<1x128xf32>
        %66 = arith.addf %62, %65 : vector<1x128xf32>
        %67 = math.rsqrt %66 : vector<1x128xf32>
        %68 = vector.broadcast %67 : vector<1x128xf32> to vector<8x128xf32>
        %69 = arith.mulf %64, %68 : vector<8x128xf32>
        %c0_41 = arith.constant 0 : index
        %c0_42 = arith.constant 0 : index
        %70 = vector.load %arg9[%c0_41, %c0_42] : memref<1x128xf32, #tpu.memory_space<vmem>>, vector<1x128xf32>
        %cst_43 = arith.constant dense<0.000000e+00> : vector<1x8xf32>
        %71 = tpu.matmul %70, %69, %cst_43 {dimension_numbers = #tpu.dot_dimension_numbers<[1], [1], [0], [0], [0, 0, 1, 0], [], []>} : vector<1x128xf32>, vector<8x128xf32>, vector<1x8xf32> -> vector<1x8xf32>
        %c0_44 = arith.constant 0 : index
        %c0_45 = arith.constant 0 : index
        %72 = vector.load %arg10[%c0_44, %c0_45] : memref<1x1xf32, #tpu.memory_space<vmem>>, vector<1x1xf32>
        %73 = vector.broadcast %72 : vector<1x1xf32> to vector<1x8xf32>
        %74 = arith.addf %71, %73 : vector<1x8xf32>
        %c0_46 = arith.constant 0 : index
        %c0_47 = arith.constant 0 : index
        %75 = vector.load %arg11[%c0_46, %c0_47] : memref<1x8xf32, #tpu.memory_space<vmem>>, vector<1x8xf32>
        tpu.vector_store %arg11[%c0_46, %c0_47], %74 {strides = array<i32>} : memref<1x8xf32, #tpu.memory_space<vmem>>, vector<1x8xf32>,
      } else {
      }
    } else {
    }
    return
  }
  func.func @transform_0(%arg0: i32, %arg1: i32) -> (i32, i32) {
    %c0_i32 = arith.constant 0 : i32
    %c0_i32_0 = arith.constant 0 : i32
    return %arg1, %c0_i32 : i32, i32
  }
  func.func @transform_1(%arg0: i32, %arg1: i32) -> (i32, i32) {
    %c0_i32 = arith.constant 0 : i32
    %c0_i32_0 = arith.constant 0 : i32
    return %arg1, %c0_i32 : i32, i32
  }
  func.func @transform_2(%arg0: i32, %arg1: i32) -> (i32, i32) {
    %c0_i32 = arith.constant 0 : i32
    %c0_i32_0 = arith.constant 0 : i32
    %c0_i32_1 = arith.constant 0 : i32
    return %c0_i32, %c0_i32_0 : i32, i32
  }
  func.func @transform_3(%arg0: i32, %arg1: i32) -> (i32, i32) {
    %c0_i32 = arith.constant 0 : i32
    %c0_i32_0 = arith.constant 0 : i32
    %c0_i32_1 = arith.constant 0 : i32
    return %c0_i32, %c0_i32_0 : i32, i32
  }
  func.func @transform_4(%arg0: i32, %arg1: i32) -> (i32, i32) {
    %c0_i32 = arith.constant 0 : i32
    %c0_i32_0 = arith.constant 0 : i32
    %c0_i32_1 = arith.constant 0 : i32
    return %c0_i32, %c0_i32_0 : i32, i32
  }
  func.func @transform_5(%arg0: i32, %arg1: i32) -> (i32, i32) {
    %c0_i32 = arith.constant 0 : i32
    %c0_i32_0 = arith.constant 0 : i32
    %c0_i32_1 = arith.constant 0 : i32
    return %c0_i32, %c0_i32_0 : i32, i32
  }
  func.func @transform_6(%arg0: i32, %arg1: i32) -> (i32, i32) {
    %c0_i32 = arith.constant 0 : i32
    %c0_i32_0 = arith.constant 0 : i32
    %c0_i32_1 = arith.constant 0 : i32
    return %c0_i32, %c0_i32_0 : i32, i32
  }
  func.func @transform_7(%arg0: i32, %arg1: i32) -> (i32, i32) {
    %c0_i32 = arith.constant 0 : i32
    %c0_i32_0 = arith.constant 0 : i32
    %c0_i32_1 = arith.constant 0 : i32
    return %c0_i32, %c0_i32_0 : i32, i32
  }
  func.func @transform_8(%arg0: i32, %arg1: i32) -> (i32, i32) {
    %c0_i32 = arith.constant 0 : i32
    %c0_i32_0 = arith.constant 0 : i32
    %c0_i32_1 = arith.constant 0 : i32
    return %c0_i32, %c0_i32_0 : i32, i32
  }
  func.func @transform_9(%arg0: i32, %arg1: i32) -> (i32, i32) {
    %c0_i32 = arith.constant 0 : i32
    %c0_i32_0 = arith.constant 0 : i32
    return %c0_i32, %arg1 : i32, i32
  }
}

</mosaic_0001>

<llo_original>
// kernel: tpu_custom_call.1
$region0: #{tpu_custom_call.1}
  #allocation0 [shape = 'u32[]', space=smem, size = 0x4, offset = 0x4, fixed_abs, tag = 'smem constant byte address 0x4 - core index']
  #allocation1 [shape = 'u32[144,128]{1,0:T(1,128)}', space=vmem, size = 0x12000, scoped, tag = 'internal scratch']
  #allocation2 [shape = 'f32[1,128]{1,0:T(1,128)}', space=vmem, size = 0x200, scoped, tag = 'scratch operand']
  #allocation3 [shape = 'f32[1,128]{1,0:T(1,128)}', space=vmem, size = 0x200, scoped, tag = 'scratch operand']
  #allocation4 [shape = 'f32[1,128]{1,0:T(1,128)}', space=vmem, size = 0x200, scoped, tag = 'scratch operand']
  #allocation5 [shape = 'f32[1,128]{1,0:T(1,128)}', space=vmem, size = 0x200, scoped, tag = 'scratch operand']
  #allocation6 [shape = 'f32[1,1]{1,0:T(1,128)S(1)}', space=vmem, size = 0x200, scoped, tag = 'scoped memory for tpu_custom_call.1']
  %s0 = inlined_call_operand.vmem [shape: f32[8,6], index: 0, kind: input, shape index: {}]
  %s1 = inlined_call_operand.vmem [shape: f32[8,2], index: 1, kind: input, shape index: {}]
  %s2 = inlined_call_operand.vmem [shape: f32[6,128], index: 2, kind: input, shape index: {}]
  %s3 = inlined_call_operand.vmem [shape: f32[2,128], index: 3, kind: input, shape index: {}]
  %s4 = inlined_call_operand.vmem [shape: f32[1,128], index: 4, kind: input, shape index: {}]
  %s5 = inlined_call_operand.hbm [shape: f32[128,128], index: 5, kind: input, shape index: {}]
  %s6 = inlined_call_operand.vmem [shape: f32[1,128], index: 6, kind: input, shape index: {}]
  %s7 = inlined_call_operand.vmem [shape: f32[1,128], index: 7, kind: input, shape index: {}]
  %s8 = inlined_call_operand.<no memory space> [shape: f32[1,1], index: 8, kind: input, shape index: {}]
  %s9 = inlined_call_operand.hbm [shape: f32[1,8], index: 9, kind: output, shape index: {}]
  %s10 = sld [smem:[#allocation0]]
  $region93: #{tpu_custom_call.1} parent=0
    _
  %s12 = ssub.s32 1, %s10
  %s13 = scalar_select 0, %s12, %s10
  %v14 = vstv %s8
  %15 = vst [vmem:[#allocation6] sm:$0x1] %v14
  $region1: #{tpu_custom_call.1} parent=0
    #allocation7 [shape = 'u8[65536]{0}', space=vmem, size = 0x10000, scoped, tag = 'input window, operand 5, single buffered']
    #allocation8 [shape = 's32[2]{0}', space=sflag, size = 0x8, scoped, tag = 'scoped memory for tpu_custom_call.1']
    #allocation9 [shape = 's32[2]{0}', space=sflag, size = 0x8, scoped, tag = 'scoped memory for tpu_custom_call.1']
    #allocation10 [shape = 'u8[512]{0}', space=vmem, size = 0x400, scoped, tag = 'output window, operand 0, single buffered']
    %16 = vsyncpa [#allocation8], 0
    %17 = vsyncpa [#allocation9], 0
    loop: start=0, step=1, limit=5
    $region2: #{tpu_custom_call.1} parent=1 // loop_pre_header
      _
    $region3: #{tpu_custom_call.1} parent=1 // loop_header
      %s19 = sphi 0, %s23
      %p20 = scmp.ge.s32.totalorder %s19, 5
      %s26 = sphi 0, %s38
      %s27 = sphi 0, %s34
      %s28 = sphi 0, %s26
      %s29 = sphi 0, %s27
      %s30 = sphi 0, %s28
      %s31 = sphi 0, %s29
      %s41 = sphi 0, %s43
      %s44 = sphi 0, %s41
      %s45 = sphi 0, %s44
      %s61 = sphi 0, %s45
      %s67 = sphi 0, %s69
      %s70 = sphi 0, %s67
      %s71 = sphi 0, %s70
      %s87 = sphi 0, %s71
      %s91 = sphi 0, %s91
      %s93 = sphi 0, %s91
      %s94 = sphi 0, %s93
      %s108 = sphi 0, %s94
      %s112 = sphi 0, %s112
      %s114 = sphi 0, %s112
      %s115 = sphi 0, %s114
      %s129 = sphi 0, %s115
      %s133 = sphi 0, %s133
      %s135 = sphi 0, %s133
      %s136 = sphi 0, %s135
      %s150 = sphi 0, %s136
      %s154 = sphi 0, %s154
      %s156 = sphi 0, %s154
      %s157 = sphi 0, %s156
      %s171 = sphi 0, %s157
      %s175 = sphi 0, %s175
      %s177 = sphi 0, %s175
      %s178 = sphi 0, %s177
      %s192 = sphi 0, %s178
      %s196 = sphi 0, %s196
      %s198 = sphi 0, %s196
      %s199 = sphi 0, %s198
      %s213 = sphi 0, %s199
      %s217 = sphi 0, %s217
      %s219 = sphi 0, %s217
      %s220 = sphi 0, %s219
      %s234 = sphi 0, %s220
      %s240 = sphi 0, %s242
      %s243 = sphi 0, %s240
      %s244 = sphi 0, %s243
      %s260 = sphi 0, %s244
    $region4: #{tpu_custom_call.1} parent=1 // loop_header_branch
      %22 = sbr.rel (%p20) target = $region8
    $region5: #{tpu_custom_call.1} parent=1 // loop_body
      %s24 = ssub.s32 %s19, 1
      %s25 = ssub.s32 %s19, 2
      %s32 = sadd.s32 1, %s27
      %p33 = scmp.ge.s32.totalorder %s32, 1
      %s34 = scalar_select %p33, 0, %s32
      %s35 = sadd.s32 1, %s26
      %s36 = scalar_select %p33, %s35, %s26
      %p37 = scmp.ge.s32.totalorder %s36, 3
      %s38 = scalar_select %p37, 0, %s36
      %s39 = ssub.s32 %s27, %s34
      %p40 = scmp.eq.s32.totalorder %s39, 0
      %s42 = sadd.s32 %s41, 1
      %s43 = scalar_select %p40, %s41, %s42
      %p46 = pneg %p40
      %p47 = scmp.eq.s32.totalorder %s19, 2
      %p48 = por %p46, %p47
      %p49 = scmp.ne.s32.totalorder %s41, %s44
      %p50 = scmp.eq.s32.totalorder %s19, 0
      %p51 = por %p49, %p50
      %p52 = scmp.ne.s32.totalorder %s41, %s44
      %p53 = scmp.eq.s32.totalorder %s24, 2
      %p54 = por %p52, %p53
      %p55 = scmp.ne.s32.totalorder %s44, %s45
      %p56 = scmp.eq.s32.totalorder %s24, 0
      %p57 = por %p55, %p56
      %p58 = scmp.ne.s32.totalorder %s44, %s45
      %p59 = scmp.eq.s32.totalorder %s25, 2
      %p60 = por %p58, %p59
      %p62 = scmp.ne.s32.totalorder %s45, %s61
      %p63 = scmp.eq.s32.totalorder %s25, 0
      %p64 = por %p62, %p63
      %s65 = ssub.s32 %s27, %s34
      %p66 = scmp.eq.s32.totalorder %s65, 0
      %s68 = sadd.s32 %s67, 1
      %s69 = scalar_select %p66, %s67, %s68
      %p72 = pneg %p66
      %p73 = scmp.eq.s32.totalorder %s19, 2
      %p74 = por %p72, %p73
      %p75 = scmp.ne.s32.totalorder %s67, %s70
      %p76 = scmp.eq.s32.totalorder %s19, 0
      %p77 = por %p75, %p76
      %p78 = scmp.ne.s32.totalorder %s67, %s70
      %p79 = scmp.eq.s32.totalorder %s24, 2
      %p80 = por %p78, %p79
      %p81 = scmp.ne.s32.totalorder %s70, %s71
      %p82 = scmp.eq.s32.totalorder %s24, 0
      %p83 = por %p81, %p82
      %p84 = scmp.ne.s32.totalorder %s70, %s71
      %p85 = scmp.eq.s32.totalorder %s25, 2
      %p86 = por %p84, %p85
      %p88 = scmp.ne.s32.totalorder %s71, %s87
      %p89 = scmp.eq.s32.totalorder %s25, 0
      %p90 = por %p88, %p89
      %s92 = sadd.s32 %s91, 1
      %p95 = scmp.eq.s32.totalorder %s19, 2
      %p96 = scmp.ne.s32.totalorder %s91, %s93
      %p97 = scmp.eq.s32.totalorder %s19, 0
      %p98 = por %p96, %p97
      %p99 = scmp.ne.s32.totalorder %s91, %s93
      %p100 = scmp.eq.s32.totalorder %s24, 2
      %p101 = por %p99, %p100
      %p102 = scmp.ne.s32.totalorder %s93, %s94
      %p103 = scmp.eq.s32.totalorder %s24, 0
      %p104 = por %p102, %p103
      %p105 = scmp.ne.s32.totalorder %s93, %s94
      %p106 = scmp.eq.s32.totalorder %s25, 2
      %p107 = por %p105, %p106
      %p109 = scmp.ne.s32.totalorder %s94, %s108
      %p110 = scmp.eq.s32.totalorder %s25, 0
      %p111 = por %p109, %p110
      %s113 = sadd.s32 %s112, 1
      %p116 = scmp.eq.s32.totalorder %s19, 2
      %p117 = scmp.ne.s32.totalorder %s112, %s114
      %p118 = scmp.eq.s32.totalorder %s19, 0
      %p119 = por %p117, %p118
      %p120 = scmp.ne.s32.totalorder %s112, %s114
      %p121 = scmp.eq.s32.totalorder %s24, 2
      %p122 = por %p120, %p121
      %p123 = scmp.ne.s32.totalorder %s114, %s115
      %p124 = scmp.eq.s32.totalorder %s24, 0
      %p125 = por %p123, %p124
      %p126 = scmp.ne.s32.totalorder %s114, %s115
      %p127 = scmp.eq.s32.totalorder %s25, 2
      %p128 = por %p126, %p127
      %p130 = scmp.ne.s32.totalorder %s115, %s129
      %p131 = scmp.eq.s32.totalorder %s25, 0
      %p132 = por %p130, %p131
      %s134 = sadd.s32 %s133, 1
      %p137 = scmp.eq.s32.totalorder %s19, 2
      %p138 = scmp.ne.s32.totalorder %s133, %s135
      %p139 = scmp.eq.s32.totalorder %s19, 0
      %p140 = por %p138, %p139
      %p141 = scmp.ne.s32.totalorder %s133, %s135
      %p142 = scmp.eq.s32.totalorder %s24, 2
      %p143 = por %p141, %p142
      %p144 = scmp.ne.s32.totalorder %s135, %s136
      %p145 = scmp.eq.s32.totalorder %s24, 0
      %p146 = por %p144, %p145
      %p147 = scmp.ne.s32.totalorder %s135, %s136
      %p148 = scmp.eq.s32.totalorder %s25, 2
      %p149 = por %p147, %p148
      %p151 = scmp.ne.s32.totalorder %s136, %s150
      %p152 = scmp.eq.s32.totalorder %s25, 0
      %p153 = por %p151, %p152
      %s155 = sadd.s32 %s154, 1
      %p158 = scmp.eq.s32.totalorder %s19, 2
      %p159 = scmp.ne.s32.totalorder %s154, %s156
      %p160 = scmp.eq.s32.totalorder %s19, 0
      %p161 = por %p159, %p160
      %p162 = scmp.ne.s32.totalorder %s154, %s156
      %p163 = scmp.eq.s32.totalorder %s24, 2
      %p164 = por %p162, %p163
      %p165 = scmp.ne.s32.totalorder %s156, %s157
      %p166 = scmp.eq.s32.totalorder %s24, 0
      %p167 = por %p165, %p166
      %p168 = scmp.ne.s32.totalorder %s156, %s157
      %p169 = scmp.eq.s32.totalorder %s25, 2
      %p170 = por %p168, %p169
      %p172 = scmp.ne.s32.totalorder %s157, %s171
      %p173 = scmp.eq.s32.totalorder %s25, 0
      %p174 = por %p172, %p173
      %s176 = sadd.s32 %s175, 1
      %p179 = scmp.eq.s32.totalorder %s19, 2
      %p180 = scmp.ne.s32.totalorder %s175, %s177
      %p181 = scmp.eq.s32.totalorder %s19, 0
      %p182 = por %p180, %p181
      %p183 = scmp.ne.s32.totalorder %s175, %s177
      %p184 = scmp.eq.s32.totalorder %s24, 2
      %p185 = por %p183, %p184
      %p186 = scmp.ne.s32.totalorder %s177, %s178
      %p187 = scmp.eq.s32.totalorder %s24, 0
      %p188 = por %p186, %p187
      %p189 = scmp.ne.s32.totalorder %s177, %s178
      %p190 = scmp.eq.s32.totalorder %s25, 2
      %p191 = por %p189, %p190
      %p193 = scmp.ne.s32.totalorder %s178, %s192
      %p194 = scmp.eq.s32.totalorder %s25, 0
      %p195 = por %p193, %p194
      %s197 = sadd.s32 %s196, 1
      %p200 = scmp.eq.s32.totalorder %s19, 2
      %p201 = scmp.ne.s32.totalorder %s196, %s198
      %p202 = scmp.eq.s32.totalorder %s19, 0
      %p203 = por %p201, %p202
      %p204 = scmp.ne.s32.totalorder %s196, %s198
      %p205 = scmp.eq.s32.totalorder %s24, 2
      %p206 = por %p204, %p205
      %p207 = scmp.ne.s32.totalorder %s198, %s199
      %p208 = scmp.eq.s32.totalorder %s24, 0
      %p209 = por %p207, %p208
      %p210 = scmp.ne.s32.totalorder %s198, %s199
      %p211 = scmp.eq.s32.totalorder %s25, 2
      %p212 = por %p210, %p211
      %p214 = scmp.ne.s32.totalorder %s199, %s213
      %p215 = scmp.eq.s32.totalorder %s25, 0
      %p216 = por %p214, %p215
      %s218 = sadd.s32 %s217, 1
      %p221 = scmp.eq.s32.totalorder %s19, 2
      %p222 = scmp.ne.s32.totalorder %s217, %s219
      %p223 = scmp.eq.s32.totalorder %s19, 0
      %p224 = por %p222, %p223
      %p225 = scmp.ne.s32.totalorder %s217, %s219
      %p226 = scmp.eq.s32.totalorder %s24, 2
      %p227 = por %p225, %p226
      %p228 = scmp.ne.s32.totalorder %s219, %s220
      %p229 = scmp.eq.s32.totalorder %s24, 0
      %p230 = por %p228, %p229
      %p231 = scmp.ne.s32.totalorder %s219, %s220
      %p232 = scmp.eq.s32.totalorder %s25, 2
      %p233 = por %p231, %p232
      %p235 = scmp.ne.s32.totalorder %s220, %s234
      %p236 = scmp.eq.s32.totalorder %s25, 0
      %p237 = por %p235, %p236
      %s238 = ssub.s32 %s27, %s34
      %p239 = scmp.eq.s32.totalorder %s238, 0
      %s241 = sadd.s32 %s240, 1
      %s242 = scalar_select %p239, %s240, %s241
      %p245 = pneg %p239
      %p246 = scmp.eq.s32.totalorder %s19, 2
      %p247 = por %p245, %p246
      %p248 = scmp.ne.s32.totalorder %s240, %s243
      %p249 = scmp.eq.s32.totalorder %s19, 0
      %p250 = por %p248, %p249
      %p251 = scmp.ne.s32.totalorder %s240, %s243
      %p252 = scmp.eq.s32.totalorder %s24, 2
      %p253 = por %p251, %p252
      %p254 = scmp.ne.s32.totalorder %s243, %s244
      %p255 = scmp.eq.s32.totalorder %s24, 0
      %p256 = por %p254, %p255
      %p257 = scmp.ne.s32.totalorder %s243, %s244
      %p258 = scmp.eq.s32.totalorder %s25, 2
      %p259 = por %p257, %p258
      %p261 = scmp.ne.s32.totalorder %s244, %s260
      %p262 = scmp.eq.s32.totalorder %s25, 0
      %p263 = por %p261, %p262
      %p264 = scmp.le.s32.totalorder 1, %s19
      %p265 = scmp.lt.s32.totalorder %s19, 4
      %p266 = pnand %p264, %p265
      %p267 = pneg %p266
      // Predicated region
      $region9: #{tpu_custom_call.1} parent=5 // pred_check
        _
      $region10: #{tpu_custom_call.1} parent=5 // pred_check_branch
        %269 = sbr.rel (%p266) target = $region12
      $region11: #{tpu_custom_call.1} parent=5 // pred_region
        %s270 = ssub.s32 %s19, 1
        // Predicated region
        $region13: #{tpu_custom_call.1} parent=11 // pred_check
          %p271 = pneg %p57
        $region14: #{tpu_custom_call.1} parent=11 // pred_check_branch
          %273 = sbr.rel (%p271) target = $region16
        $region15: #{tpu_custom_call.1} parent=11 // pred_region
          %p274 = scmp.lt.s32.totalorder %s29, 0
          %s275 = scalar_select %p274, %s29, 0
          %s276 = smul.addr %s275, 8
          %s277 = scalar_lea.vmem %s0, %s276
        $region16: #{tpu_custom_call.1} parent=11 // pred_fallthru
          _
        // Predicated region
        $region17: #{tpu_custom_call.1} parent=11 // pred_check
          %p278 = pneg %p83
        $region18: #{tpu_custom_call.1} parent=11 // pred_check_branch
          %280 = sbr.rel (%p278) target = $region20
        $region19: #{tpu_custom_call.1} parent=11 // pred_region
          %p281 = scmp.lt.s32.totalorder %s29, 0
          %s282 = scalar_select %p281, %s29, 0
          %s283 = smul.addr %s282, 8
          %s284 = scalar_lea.vmem %s1, %s283
        $region20: #{tpu_custom_call.1} parent=11 // pred_fallthru
          _
        // Predicated region
        $region21: #{tpu_custom_call.1} parent=11 // pred_check
          %p285 = pneg %p104
        $region22: #{tpu_custom_call.1} parent=11 // pred_check_branch
          %287 = sbr.rel (%p285) target = $region24
        $region23: #{tpu_custom_call.1} parent=11 // pred_region
          _
        $region24: #{tpu_custom_call.1} parent=11 // pred_fallthru
          _
        // Predicated region
        $region25: #{tpu_custom_call.1} parent=11 // pred_check
          %p288 = pneg %p125
        $region26: #{tpu_custom_call.1} parent=11 // pred_check_branch
          %290 = sbr.rel (%p288) target = $region28
        $region27: #{tpu_custom_call.1} parent=11 // pred_region
          _
        $region28: #{tpu_custom_call.1} parent=11 // pred_fallthru
          _
        // Predicated region
        $region29: #{tpu_custom_call.1} parent=11 // pred_check
          %p291 = pneg %p146
        $region30: #{tpu_custom_call.1} parent=11 // pred_check_branch
          %293 = sbr.rel (%p291) target = $region32
        $region31: #{tpu_custom_call.1} parent=11 // pred_region
          _
        $region32: #{tpu_custom_call.1} parent=11 // pred_fallthru
          _
        // Predicated region
        $region33: #{tpu_custom_call.1} parent=11 // pred_check
          %p294 = pneg %p167
        $region34: #{tpu_custom_call.1} parent=11 // pred_check_branch
          %296 = sbr.rel (%p294) target = $region36
        $region35: #{tpu_custom_call.1} parent=11 // pred_region
          %s298 = ssub.s32 2048, 2048
          %299 = vsyncadd [#allocation8], %s298
          %s300 = sshll.u32 [#allocation7], 4
          %s301 = int_to_ptr.vmem [resolvable:$true] %s300
          %306 = dma.hbm_to_vmem [thread:$0]  %s5, 2048, %s301, [#allocation8], 128, 128, 8
        $region36: #{tpu_custom_call.1} parent=11 // pred_fallthru
          _
        // Predicated region
        $region37: #{tpu_custom_call.1} parent=11 // pred_check
          %p307 = pneg %p188
        $region38: #{tpu_custom_call.1} parent=11 // pred_check_branch
          %309 = sbr.rel (%p307) target = $region40
        $region39: #{tpu_custom_call.1} parent=11 // pred_region
          _
        $region40: #{tpu_custom_call.1} parent=11 // pred_fallthru
          _
        // Predicated region
        $region41: #{tpu_custom_call.1} parent=11 // pred_check
          %p310 = pneg %p209
        $region42: #{tpu_custom_call.1} parent=11 // pred_check_branch
          %312 = sbr.rel (%p310) target = $region44
        $region43: #{tpu_custom_call.1} parent=11 // pred_region
          _
        $region44: #{tpu_custom_call.1} parent=11 // pred_fallthru
          _
        // Predicated region
        $region45: #{tpu_custom_call.1} parent=11 // pred_check
          %p313 = pneg %p230
        $region46: #{tpu_custom_call.1} parent=11 // pred_check_branch
          %315 = sbr.rel (%p313) target = $region48
        $region47: #{tpu_custom_call.1} parent=11 // pred_region
          _
        $region48: #{tpu_custom_call.1} parent=11 // pred_fallthru
          _
      $region12: #{tpu_custom_call.1} parent=5 // pred_fallthru
        _
      %p316 = scmp.lt.s32.totalorder %s19, 3
      // Predicated region
      $region49: #{tpu_custom_call.1} parent=5 // pred_check
        %p317 = pneg %p316
      $region50: #{tpu_custom_call.1} parent=5 // pred_check_branch
        %319 = sbr.rel (%p317) target = $region52
      $region51: #{tpu_custom_call.1} parent=5 // pred_region
        _
      $region52: #{tpu_custom_call.1} parent=5 // pred_fallthru
        _
      %p320 = scmp.le.s32.totalorder 1, %s19
      %p321 = scmp.lt.s32.totalorder %s19, 4
      %p322 = pnand %p320, %p321
      %p323 = pneg %p322
      // Predicated region
      $region53: #{tpu_custom_call.1} parent=5 // pred_check
        _
      $region54: #{tpu_custom_call.1} parent=5 // pred_check_branch
        %325 = sbr.rel (%p322) target = $region56
      $region55: #{tpu_custom_call.1} parent=5 // pred_region
        %s326 = ssub.s32 %s19, 1
        // Predicated region
        $region57: #{tpu_custom_call.1} parent=55 // pred_check
          %p327 = pneg %p167
        $region58: #{tpu_custom_call.1} parent=55 // pred_check_branch
          %329 = sbr.rel (%p327) target = $region60
        $region59: #{tpu_custom_call.1} parent=55 // pred_region
          %330 = dma.done [#allocation8], 2048
        $region60: #{tpu_custom_call.1} parent=55 // pred_fallthru
          _
        %p331 = scmp.lt.s32.totalorder %s29, 0
        %s332 = scalar_select %p331, %s29, 0
        %s333 = smul.addr %s332, 8
        %s334 = scalar_lea.vmem %s0, %s333
        %p335 = pneg %p57
        %p336 = pneg %p54
        %p337 = scmp.lt.s32.totalorder %s29, 0
        %s338 = scalar_select %p337, %s29, 0
        %s339 = smul.addr %s338, 8
        %s340 = scalar_lea.vmem %s1, %s339
        %p341 = pneg %p83
        %p342 = pneg %p80
        %p343 = pneg %p104
        %p344 = pneg %p101
        %p345 = pneg %p125
        %p346 = pneg %p122
        %p347 = pneg %p146
        %p348 = pneg %p143
        %p349 = pneg %p167
        %p350 = pneg %p164
        %p351 = pneg %p188
        %p352 = pneg %p185
        %p353 = pneg %p209
        %p354 = pneg %p206
        %p355 = pneg %p230
        %p356 = pneg %p227
        %p357 = pneg %p256
        %p358 = pneg %p253
        %p359 = scmp.lt.s32.totalorder %s29, 0
        %s360 = scalar_select %p359, %s29, 0
        %s361 = smul.addr %s360, 8
        %s362 = scalar_lea.vmem %s0, %s361
        %p363 = scmp.lt.s32.totalorder %s29, 0
        %s364 = scalar_select %p363, %s29, 0
        %s365 = smul.addr %s364, 8
        %s366 = scalar_lea.vmem %s1, %s365
        %p367 = scmp.eq.s32.totalorder %s28, 0
        %p368 = scmp.eq.s32.totalorder %s29, 0
        %p369 = pnand %p367, %p368
        %p370 = pneg %p369
        // Predicated region
        $region61: #{tpu_custom_call.1} parent=55 // pred_check
          _
        $region62: #{tpu_custom_call.1} parent=55 // pred_check_branch
          %372 = sbr.rel (%p369) target = $region64
        $region63: #{tpu_custom_call.1} parent=55 // pred_region
          %373 = vst [vmem:[#allocation2] sm:$0x1] 0.0
          %374 = vst [vmem:[#allocation3] sm:$0x1] 0.0
          %375 = vst [vmem:[#allocation4] sm:$0x1] 0.0
          %376 = vst [vmem:[#allocation5] sm:$0x1] 0.0
        $region64: #{tpu_custom_call.1} parent=55 // pred_fallthru
          _
        %v377 = vld [vmem:[%s362] sm:$0xff]
        %v378 = vld [vmem:[%s2] sm:$0x3f]
        %v379 = vld [vmem:[%s366] sm:$0xff]
        %v380 = vld [vmem:[%s3] sm:$0x3]
        %vm381 = vcmask 15360
        %v383 = vsel %vm381, %v379, 0
        %vm385 = vcmask 1041408
        %v387 = vsel %vm385, %v380, 0
        %389 = vmatprep.subr.mxu0 0.0
        %390 = vmatpush1.msra.mxu0 %v387
        %391 = vmatprep.subr.mxu0 0.0
        %392 = vmatpush1.msra.mxu0 0.0
        %393 = vmatprep.subr.mxu0 0.0
        %394 = vmatpush1.msra.mxu0 0.0
        %395 = vmatprep.subr.mxu0 0.0
        %396 = vmatpush1.msra.mxu0 0.0
        %397 = vmatprep.subr.mxu0 0.0
        %398 = vmatpush1.msra.mxu0 0.0
        %399 = vmatprep.subr.mxu0 0.0
        %400 = vmatpush1.msra.mxu0 0.0
        %401 = vmatprep.subr.mxu0 0.0
        %402 = vmatpush1.msra.mxu0 0.0
        %403 = vmatprep.subr.mxu0 0.0
        %404 = vmatpush1.msra.mxu0 0.0
        %405 = vmatprep.subr.mxu0 0.0
        %406 = vmatpush1.msra.mxu0 0.0
        %407 = vmatprep.subr.mxu0 0.0
        %408 = vmatpush1.msra.mxu0 0.0
        %409 = vmatprep.subr.mxu0 0.0
        %410 = vmatpush1.msra.mxu0 0.0
        %411 = vmatprep.subr.mxu0 0.0
        %412 = vmatpush1.msra.mxu0 0.0
        %413 = vmatprep.subr.mxu0 0.0
        %414 = vmatpush1.msra.mxu0 0.0
        %415 = vmatprep.subr.mxu0 0.0
        %416 = vmatpush1.msra.mxu0 0.0
        %417 = vmatprep.subr.mxu0 0.0
        %418 = vmatpush1.msra.mxu0 0.0
        %419 = vmatprep.subr.mxu0 0.0
        %420 = vmatpush1.msra.mxu0 0.0
        %421 = vmatprep.subr.mxu0 0.0
        %422 = vmatpush1.msra.mxu0 0.0
        %423 = vmatprep.subr.mxu0 0.0
        %424 = vmatpush1.msra.mxu0 0.0
        %425 = vmatprep.subr.mxu0 0.0
        %426 = vmatpush1.msra.mxu0 0.0
        %427 = vmatprep.subr.mxu0 0.0
        %428 = vmatpush1.msra.mxu0 0.0
        %429 = vmatprep.subr.mxu0 0.0
        %430 = vmatpush1.msra.mxu0 0.0
        %431 = vmatprep.subr.mxu0 0.0
        %432 = vmatpush1.msra.mxu0 0.0
        %433 = vmatprep.subr.mxu0 0.0
        %434 = vmatpush1.msra.mxu0 0.0
        %435 = vmatprep.subr.mxu0 0.0
        %436 = vmatpush1.msra.mxu0 0.0
        %437 = vmatprep.subr.mxu0 0.0
        %438 = vmatpush1.msra.mxu0 0.0
        %439 = vmatprep.subr.mxu0 0.0
        %440 = vmatpush1.msra.mxu0 0.0
        %441 = vmatprep.subr.mxu0 0.0
        %442 = vmatpush1.msra.mxu0 0.0
        %443 = vmatprep.subr.mxu0 0.0
        %444 = vmatpush1.msra.mxu0 0.0
        %445 = vmatprep.subr.mxu0 0.0
        %446 = vmatpush1.msra.mxu0 0.0
        %447 = vmatprep.subr.mxu0 0.0
        %448 = vmatpush1.msra.mxu0 0.0
        %449 = vmatprep.subr.mxu0 0.0
        %450 = vmatpush1.msra.mxu0 0.0
        %451 = vmatprep.subr.mxu0 0.0
        %452 = vmatpush1.msra.mxu0 0.0
        %453 = vmatprep.mubr.f32.mxu0 0.0
        %454 = vmatmul.mubr.f32.gmra.mrb[0].mxu0 %v383
        %v455 = vpop.f32.mrb[0].mxu0
        %v456 = vadd.f32 0.0, %v455
        %v457 = vpop.f32.mrb[0].mxu0
        %458 = vdwg.mxu0
        %vm459 = vcmask 48128
        %v461 = vsel %vm459, %v377, 0
        %vm463 = vcmask 1045504
        %v465 = vsel %vm463, %v378, 0
        %467 = vmatprep.subr.mxu0 0.0
        %468 = vmatpush1.msra.mxu0 %v465
        %469 = vmatprep.subr.mxu0 0.0
        %470 = vmatpush1.msra.mxu0 0.0
        %471 = vmatprep.subr.mxu0 0.0
        %472 = vmatpush1.msra.mxu0 0.0
        %473 = vmatprep.subr.mxu0 0.0
        %474 = vmatpush1.msra.mxu0 0.0
        %475 = vmatprep.subr.mxu0 0.0
        %476 = vmatpush1.msra.mxu0 0.0
        %477 = vmatprep.subr.mxu0 0.0
        %478 = vmatpush1.msra.mxu0 0.0
        %479 = vmatprep.subr.mxu0 0.0
        %480 = vmatpush1.msra.mxu0 0.0
        %481 = vmatprep.subr.mxu0 0.0
        %482 = vmatpush1.msra.mxu0 0.0
        %483 = vmatprep.subr.mxu0 0.0
        %484 = vmatpush1.msra.mxu0 0.0
        %485 = vmatprep.subr.mxu0 0.0
        %486 = vmatpush1.msra.mxu0 0.0
        %487 = vmatprep.subr.mxu0 0.0
        %488 = vmatpush1.msra.mxu0 0.0
        %489 = vmatprep.subr.mxu0 0.0
        %490 = vmatpush1.msra.mxu0 0.0
        %491 = vmatprep.subr.mxu0 0.0
        %492 = vmatpush1.msra.mxu0 0.0
        %493 = vmatprep.subr.mxu0 0.0
        %494 = vmatpush1.msra.mxu0 0.0
        %495 = vmatprep.subr.mxu0 0.0
        %496 = vmatpush1.msra.mxu0 0.0
        %497 = vmatprep.subr.mxu0 0.0
        %498 = vmatpush1.msra.mxu0 0.0
        %499 = vmatprep.subr.mxu0 0.0
        %500 = vmatpush1.msra.mxu0 0.0
        %501 = vmatprep.subr.mxu0 0.0
        %502 = vmatpush1.msra.mxu0 0.0
        %503 = vmatprep.subr.mxu0 0.0
        %504 = vmatpush1.msra.mxu0 0.0
        %505 = vmatprep.subr.mxu0 0.0
        %506 = vmatpush1.msra.mxu0 0.0
        %507 = vmatprep.subr.mxu0 0.0
        %508 = vmatpush1.msra.mxu0 0.0
        %509 = vmatprep.subr.mxu0 0.0
        %510 = vmatpush1.msra.mxu0 0.0
        %511 = vmatprep.subr.mxu0 0.0
        %512 = vmatpush1.msra.mxu0 0.0
        %513 = vmatprep.subr.mxu0 0.0
        %514 = vmatpush1.msra.mxu0 0.0
        %515 = vmatprep.subr.mxu0 0.0
        %516 = vmatpush1.msra.mxu0 0.0
        %517 = vmatprep.subr.mxu0 0.0
        %518 = vmatpush1.msra.mxu0 0.0
        %519 = vmatprep.subr.mxu0 0.0
        %520 = vmatpush1.msra.mxu0 0.0
        %521 = vmatprep.subr.mxu0 0.0
        %522 = vmatpush1.msra.mxu0 0.0
        %523 = vmatprep.subr.mxu0 0.0
        %524 = vmatpush1.msra.mxu0 0.0
        %525 = vmatprep.subr.mxu0 0.0
        %526 = vmatpush1.msra.mxu0 0.0
        %527 = vmatprep.subr.mxu0 0.0
        %528 = vmatpush1.msra.mxu0 0.0
        %529 = vmatprep.subr.mxu0 0.0
        %530 = vmatpush1.msra.mxu0 0.0
        %531 = vmatprep.mubr.f32.mxu0 0.0
        %532 = vmatmul.mubr.f32.gmra.mrb[0].mxu0 %v461
        %v533 = vpop.f32.mrb[0].mxu0
        %v534 = vadd.f32 %v456, %v533
        %v535 = vpop.f32.mrb[0].mxu0
        %536 = vdwg.mxu0
        %v537 = vld [vmem:[%s4] sm:$0x1]
        %v539 = vlaneseq
        %v540 = vshrl.u32 %v539, 7
        %v541 = vsub.s32 0, %v540
        %v542 = vrot.slane %v537, %v541
        %v544 = vadd.f32 %v534, %v542
        %v545 = vmax.f32 %v544, 0.0
        // Predicated region
        $region65: #{tpu_custom_call.1} parent=55 // pred_check
          %p546 = pneg %p367
        $region66: #{tpu_custom_call.1} parent=55 // pred_check_branch
          %548 = sbr.rel (%p546) target = $region68
        $region67: #{tpu_custom_call.1} parent=55 // pred_region
          %v549 = vld [vmem:[#allocation2] sm:$0x1]
          %v550 = vrot.slane %v545, 4
          %v551 = vadd.f32 %v545, %v550
          %v552 = vrot.slane %v551, 2
          %v553 = vadd.f32 %v551, %v552
          %v554 = vrot.slane %v553, 1
          %v555 = vadd.f32 %v553, %v554
          %v556 = vadd.f32 %v549, %v555
          %557 = vst [vmem:[#allocation2] sm:$0x1] %v556
          %v558 = vld [vmem:[#allocation3] sm:$0x1]
          %v559 = vmul.f32 %v545, %v545
          %v560 = vrot.slane %v559, 4
          %v561 = vadd.f32 %v559, %v560
          %v562 = vrot.slane %v561, 2
          %v563 = vadd.f32 %v561, %v562
          %v564 = vrot.slane %v563, 1
          %v565 = vadd.f32 %v563, %v564
          %v566 = vadd.f32 %v558, %v565
          %567 = vst [vmem:[#allocation3] sm:$0x1] %v566
        $region68: #{tpu_custom_call.1} parent=55 // pred_fallthru
          _
        %p568 = scmp.ge.s32.totalorder %s28, 1
        // Predicated region
        $region69: #{tpu_custom_call.1} parent=55 // pred_check
          %p569 = pneg %p568
        $region70: #{tpu_custom_call.1} parent=55 // pred_check_branch
          %571 = sbr.rel (%p569) target = $region72
        $region71: #{tpu_custom_call.1} parent=55 // pred_region
          %v572 = vld [vmem:[#allocation2] sm:$0x1]
          %v573 = vmul.f32 %v572, 0.125
          %v574 = vld [vmem:[#allocation3] sm:$0x1]
          %v575 = vmul.f32 %v574, 0.125
          %v576 = vmul.f32 %v573, %v573
          %v577 = vsub.f32 %v575, %v576
          %v578 = vmax.f32 %v577, 0.0
          %v580 = vlaneseq
          %v581 = vshrl.u32 %v580, 7
          %v582 = vsub.s32 0, %v581
          %v583 = vrot.slane %v573, %v582
          %v585 = vsub.f32 %v545, %v583
          %v586 = vadd.f32 %v578, 1e-05
          %v587 = vrsqrt.pop %v586
          %v589 = vlaneseq
          %v590 = vshrl.u32 %v589, 7
          %v591 = vsub.s32 0, %v590
          %v592 = vrot.slane %v587, %v591
          %v594 = vmul.f32 %v585, %v592
          %v595 = vld [vmem:[#allocation7] sm:$0xff]
          %v596 = vld [vmem:[#allocation7 + $0x8] sm:$0xff]
          %v597 = vld [vmem:[#allocation7 + $0x10] sm:$0xff]
          %v598 = vld [vmem:[#allocation7 + $0x18] sm:$0xff]
          %v599 = vld [vmem:[#allocation7 + $0x20] sm:$0xff]
          %v600 = vld [vmem:[#allocation7 + $0x28] sm:$0xff]
          %v601 = vld [vmem:[#allocation7 + $0x30] sm:$0xff]
          %v602 = vld [vmem:[#allocation7 + $0x38] sm:$0xff]
          %v603 = vld [vmem:[#allocation7 + $0x40] sm:$0xff]
          %v604 = vld [vmem:[#allocation7 + $0x48] sm:$0xff]
          %v605 = vld [vmem:[#allocation7 + $0x50] sm:$0xff]
          %v606 = vld [vmem:[#allocation7 + $0x58] sm:$0xff]
          %v607 = vld [vmem:[#allocation7 + $0x60] sm:$0xff]
          %v608 = vld [vmem:[#allocation7 + $0x68] sm:$0xff]
          %v609 = vld [vmem:[#allocation7 + $0x70] sm:$0xff]
          %v610 = vld [vmem:[#allocation7 + $0x78] sm:$0xff]
          %v611 = vld [vmem:[%s6] sm:$0x1]
          %v613 = vlaneseq
          %v614 = vshrl.u32 %v613, 7
          %v615 = vsub.s32 0, %v614
          %v616 = vrot.slane %v611, %v615
          %618 = vmatprep.subr.mxu0 0.0
          %619 = vmatpush1.msra.mxu0 %v595
          %620 = vmatprep.subr.mxu0 0.0
          %621 = vmatpush1.msra.mxu0 %v596
          %622 = vmatprep.subr.mxu0 0.0
          %623 = vmatpush1.msra.mxu0 %v597
          %624 = vmatprep.subr.mxu0 0.0
          %625 = vmatpush1.msra.mxu0 %v598
          %626 = vmatprep.subr.mxu0 0.0
          %627 = vmatpush1.msra.mxu0 %v599
          %628 = vmatprep.subr.mxu0 0.0
          %629 = vmatpush1.msra.mxu0 %v600
          %630 = vmatprep.subr.mxu0 0.0
          %631 = vmatpush1.msra.mxu0 %v601
          %632 = vmatprep.subr.mxu0 0.0
          %633 = vmatpush1.msra.mxu0 %v602
          %634 = vmatprep.subr.mxu0 0.0
          %635 = vmatpush1.msra.mxu0 %v603
          %636 = vmatprep.subr.mxu0 0.0
          %637 = vmatpush1.msra.mxu0 %v604
          %638 = vmatprep.subr.mxu0 0.0
          %639 = vmatpush1.msra.mxu0 %v605
          %640 = vmatprep.subr.mxu0 0.0
          %641 = vmatpush1.msra.mxu0 %v606
          %642 = vmatprep.subr.mxu0 0.0
          %643 = vmatpush1.msra.mxu0 %v607
          %644 = vmatprep.subr.mxu0 0.0
          %645 = vmatpush1.msra.mxu0 %v608
          %646 = vmatprep.subr.mxu0 0.0
          %647 = vmatpush1.msra.mxu0 %v609
          %648 = vmatprep.subr.mxu0 0.0
          %649 = vmatpush1.msra.mxu0 %v610
          %650 = vmatprep.subr.mxu0 0.0
          %651 = vmatpush1.msra.mxu0 0.0
          %652 = vmatprep.subr.mxu0 0.0
          %653 = vmatpush1.msra.mxu0 0.0
          %654 = vmatprep.subr.mxu0 0.0
          %655 = vmatpush1.msra.mxu0 0.0
          %656 = vmatprep.subr.mxu0 0.0
          %657 = vmatpush1.msra.mxu0 0.0
          %658 = vmatprep.subr.mxu0 0.0
          %659 = vmatpush1.msra.mxu0 0.0
          %660 = vmatprep.subr.mxu0 0.0
          %661 = vmatpush1.msra.mxu0 0.0
          %662 = vmatprep.subr.mxu0 0.0
          %663 = vmatpush1.msra.mxu0 0.0
          %664 = vmatprep.subr.mxu0 0.0
          %665 = vmatpush1.msra.mxu0 0.0
          %666 = vmatprep.subr.mxu0 0.0
          %667 = vmatpush1.msra.mxu0 0.0
          %668 = vmatprep.subr.mxu0 0.0
          %669 = vmatpush1.msra.mxu0 0.0
          %670 = vmatprep.subr.mxu0 0.0
          %671 = vmatpush1.msra.mxu0 0.0
          %672 = vmatprep.subr.mxu0 0.0
          %673 = vmatpush1.msra.mxu0 0.0
          %674 = vmatprep.subr.mxu0 0.0
          %675 = vmatpush1.msra.mxu0 0.0
          %676 = vmatprep.subr.mxu0 0.0
          %677 = vmatpush1.msra.mxu0 0.0
          %678 = vmatprep.subr.mxu0 0.0
          %679 = vmatpush1.msra.mxu0 0.0
          %680 = vmatprep.subr.mxu0 0.0
          %681 = vmatpush1.msra.mxu0 0.0
          %682 = vmatprep.mubr.f32.mxu0 0.0
          %683 = vmatmul.mubr.f32.gmra.mrb[0].mxu0 %v594
          %v684 = vpop.f32.mrb[0].mxu0
          %v685 = vadd.f32 %v616, %v684
          %v686 = vpop.f32.mrb[0].mxu0
          %687 = vdwg.mxu0
          %v688 = vmax.f32 %v685, 0.0
          %p689 = scmp.eq.s32.totalorder %s28, 1
          // Predicated region
          $region73: #{tpu_custom_call.1} parent=71 // pred_check
            %p690 = pneg %p689
          $region74: #{tpu_custom_call.1} parent=71 // pred_check_branch
            %692 = sbr.rel (%p690) target = $region76
          $region75: #{tpu_custom_call.1} parent=71 // pred_region
            %v693 = vld [vmem:[#allocation4] sm:$0x1]
            %v694 = vrot.slane %v688, 4
            %v695 = vadd.f32 %v688, %v694
            %v696 = vrot.slane %v695, 2
            %v697 = vadd.f32 %v695, %v696
            %v698 = vrot.slane %v697, 1
            %v699 = vadd.f32 %v697, %v698
            %v700 = vadd.f32 %v693, %v699
            %701 = vst [vmem:[#allocation4] sm:$0x1] %v700
            %v702 = vld [vmem:[#allocation5] sm:$0x1]
            %v703 = vmul.f32 %v688, %v688
            %v704 = vrot.slane %v703, 4
            %v705 = vadd.f32 %v703, %v704
            %v706 = vrot.slane %v705, 2
            %v707 = vadd.f32 %v705, %v706
            %v708 = vrot.slane %v707, 1
            %v709 = vadd.f32 %v707, %v708
            %v710 = vadd.f32 %v702, %v709
            %711 = vst [vmem:[#allocation5] sm:$0x1] %v710
          $region76: #{tpu_custom_call.1} parent=71 // pred_fallthru
            _
          %p712 = scmp.eq.s32.totalorder %s28, 2
          // Predicated region
          $region77: #{tpu_custom_call.1} parent=71 // pred_check
            %p713 = pneg %p712
          $region78: #{tpu_custom_call.1} parent=71 // pred_check_branch
            %715 = sbr.rel (%p713) target = $region80
          $region79: #{tpu_custom_call.1} parent=71 // pred_region
            %v716 = vld [vmem:[#allocation4] sm:$0x1]
            %v717 = vmul.f32 %v716, 0.125
            %v718 = vld [vmem:[#allocation5] sm:$0x1]
            %v719 = vmul.f32 %v718, 0.125
            %v720 = vmul.f32 %v717, %v717
            %v721 = vsub.f32 %v719, %v720
            %v722 = vmax.f32 %v721, 0.0
            %v724 = vlaneseq
            %v725 = vshrl.u32 %v724, 7
            %v726 = vsub.s32 0, %v725
            %v727 = vrot.slane %v717, %v726
            %v729 = vsub.f32 %v688, %v727
            %v730 = vadd.f32 %v722, 1e-05
            %v731 = vrsqrt.pop %v730
            %v733 = vlaneseq
            %v734 = vshrl.u32 %v733, 7
            %v735 = vsub.s32 0, %v734
            %v736 = vrot.slane %v731, %v735
            %v738 = vmul.f32 %v729, %v736
            %v739 = vld [vmem:[%s7] sm:$0x1]
            %v740 = vld [vmem:[#allocation6] sm:$0x1]
            %742 = vset.pattern.permute.xlu0 0
            %743 = vperm.xlu0 %742, %v740
            %v744 = vpop.permute.xlu0 %743
            %v746 = vlaneseq
            %v747 = vshrl.u32 %v746, 7
            %v748 = vsub.s32 0, %v747
            %v749 = vrot.slane %v744, %v748
            %750 = vmatprep.subr.mxu0 0.0
            %751 = vmatpush1.xpose.msra.mxu0 %v738
            %752 = vmatprep.subr.mxu0 0.0
            %753 = vmatpush1.xpose.msra.mxu0 0.0
            %754 = vmatprep.subr.mxu0 0.0
            %755 = vmatpush1.xpose.msra.mxu0 0.0
            %756 = vmatprep.subr.mxu0 0.0
            %757 = vmatpush1.xpose.msra.mxu0 0.0
            %758 = vmatprep.subr.mxu0 0.0
            %759 = vmatpush1.xpose.msra.mxu0 0.0
            %760 = vmatprep.subr.mxu0 0.0
            %761 = vmatpush1.xpose.msra.mxu0 0.0
            %762 = vmatprep.subr.mxu0 0.0
            %763 = vmatpush1.xpose.msra.mxu0 0.0
            %764 = vmatprep.subr.mxu0 0.0
            %765 = vmatpush1.xpose.msra.mxu0 0.0
            %766 = vmatprep.subr.mxu0 0.0
            %767 = vmatpush1.xpose.msra.mxu0 0.0
            %768 = vmatprep.subr.mxu0 0.0
            %769 = vmatpush1.xpose.msra.mxu0 0.0
            %770 = vmatprep.subr.mxu0 0.0
            %771 = vmatpush1.xpose.msra.mxu0 0.0
            %772 = vmatprep.subr.mxu0 0.0
            %773 = vmatpush1.xpose.msra.mxu0 0.0
            %774 = vmatprep.subr.mxu0 0.0
            %775 = vmatpush1.xpose.msra.mxu0 0.0
            %776 = vmatprep.subr.mxu0 0.0
            %777 = vmatpush1.xpose.msra.mxu0 0.0
            %778 = vmatprep.subr.mxu0 0.0
            %779 = vmatpush1.xpose.msra.mxu0 0.0
            %780 = vmatprep.subr.mxu0 0.0
            %781 = vmatpush1.xpose.msra.mxu0 0.0
            %782 = vmatprep.subr.mxu0 0.0
            %783 = vmatpush1.xpose.msra.mxu0 0.0
            %784 = vmatprep.subr.mxu0 0.0
            %785 = vmatpush1.xpose.msra.mxu0 0.0
            %786 = vmatprep.subr.mxu0 0.0
            %787 = vmatpush1.xpose.msra.mxu0 0.0
            %788 = vmatprep.subr.mxu0 0.0
            %789 = vmatpush1.xpose.msra.mxu0 0.0
            %790 = vmatprep.subr.mxu0 0.0
            %791 = vmatpush1.xpose.msra.mxu0 0.0
            %792 = vmatprep.subr.mxu0 0.0
            %793 = vmatpush1.xpose.msra.mxu0 0.0
            %794 = vmatprep.subr.mxu0 0.0
            %795 = vmatpush1.xpose.msra.mxu0 0.0
            %796 = vmatprep.subr.mxu0 0.0
            %797 = vmatpush1.xpose.msra.mxu0 0.0
            %798 = vmatprep.subr.mxu0 0.0
            %799 = vmatpush1.xpose.msra.mxu0 0.0
            %800 = vmatprep.subr.mxu0 0.0
            %801 = vmatpush1.xpose.msra.mxu0 0.0
            %802 = vmatprep.subr.mxu0 0.0
            %803 = vmatpush1.xpose.msra.mxu0 0.0
            %804 = vmatprep.subr.mxu0 0.0
            %805 = vmatpush1.xpose.msra.mxu0 0.0
            %806 = vmatprep.subr.mxu0 0.0
            %807 = vmatpush1.xpose.msra.mxu0 0.0
            %808 = vmatprep.subr.mxu0 0.0
            %809 = vmatpush1.xpose.msra.mxu0 0.0
            %810 = vmatprep.subr.mxu0 0.0
            %811 = vmatpush1.xpose.msra.mxu0 0.0
            %812 = vmatprep.subr.mxu0 0.0
            %813 = vmatpush1.xpose.msra.mxu0 0.0
            %814 = vmatprep.mubr.f32.mxu0 0.0
            %815 = vmatmul.mubr.f32.gmra.mrb[0].mxu0 %v739
            %v816 = vpop.f32.mrb[0].mxu0
            %v817 = vadd.f32 %v749, %v816
            %v818 = vpop.f32.mrb[0].mxu0
            %819 = vdwg.mxu0
            %vm820 = vcmask 57344
            %821 = vst.msk [vmem:[#allocation10] sm:$0x1] %vm820, %v817
          $region80: #{tpu_custom_call.1} parent=71 // pred_fallthru
            _
        $region72: #{tpu_custom_call.1} parent=55 // pred_fallthru
          _
        // Predicated region
        $region81: #{tpu_custom_call.1} parent=55 // pred_check
          %p822 = pneg %p253
        $region82: #{tpu_custom_call.1} parent=55 // pred_check_branch
          %824 = sbr.rel (%p822) target = $region84
        $region83: #{tpu_custom_call.1} parent=55 // pred_region
          %s826 = ssub.s32 16, 16
          %827 = vsyncadd [#allocation9], %s826
          %s828 = smul.addr %s29, 16
          %s829 = scalar_lea.hbm %s9, %s828
          %s831 = sshll.u32 [#allocation10], 4
          %s832 = int_to_ptr.vmem [resolvable:$true] %s831
          %834 = dma.vmem_to_hbm [thread:$0]  %s832, 16, %s829, [#allocation9]
        $region84: #{tpu_custom_call.1} parent=55 // pred_fallthru
          _
        // Predicated region
        $region85: #{tpu_custom_call.1} parent=55 // pred_check
          %p835 = pneg %p253
        $region86: #{tpu_custom_call.1} parent=55 // pred_check_branch
          %837 = sbr.rel (%p835) target = $region88
        $region87: #{tpu_custom_call.1} parent=55 // pred_region
          %838 = dma.done [#allocation9], 16
        $region88: #{tpu_custom_call.1} parent=55 // pred_fallthru
          _
      $region56: #{tpu_custom_call.1} parent=5 // pred_fallthru
        _
      %p839 = scmp.le.s32.totalorder 2, %s19
      // Predicated region
      $region89: #{tpu_custom_call.1} parent=5 // pred_check
        %p840 = pneg %p839
      $region90: #{tpu_custom_call.1} parent=5 // pred_check_branch
        %842 = sbr.rel (%p840) target = $region92
      $region91: #{tpu_custom_call.1} parent=5 // pred_region
        %s843 = ssub.s32 %s19, 2
      $region92: #{tpu_custom_call.1} parent=5 // pred_fallthru
        _
    $region6: #{tpu_custom_call.1} parent=1 // loop_footer
      %s23 = sadd.s32 1, %s19
    $region7: #{tpu_custom_call.1} parent=1 // loop_footer_branch
      %18 = sbr.rel target = $region3
    $region8: #{tpu_custom_call.1} parent=1 // loop_exit
      _
    %844 = vsyncpa [#allocation8], 1
    %s845 = scalar_lea.sflag [#allocation8], 1
    %846 = vsyncpa %s845, 1
    %847 = vsyncpa [#allocation9], 1
    %s848 = scalar_lea.sflag [#allocation9], 1
    %849 = vsyncpa %s848, 1

</llo_original>
